<compile_context>
chip_gen: v7x
topology: tpu7x:2x2x1
jax: 0.10.0
libtpu: 0.0.40
codegen_flags: <defaults>
</compile_context>

<pallas_src>
import jax
import jax.numpy as jnp
from jax.experimental import pallas as pl
from jax.experimental.pallas import tpu as pltpu


def _birnn_seq_kernel(xs_ref, h0_ref, c0_ref, wx_ref, wh_ref, b_ref,
                      out_f_ref, out_b_ref, hn_ref, cn_ref):
    """Full bidirectional LSTM pass over a (T, E) sequence (batch=1) in one invocation.

    xs_ref   : (T, E)         input sequence
    h0_ref   : (2, H2)        initial hidden  [fwd, bwd]
    c0_ref   : (2, H2)        initial cell    [fwd, bwd]
    wx_ref   : (2, E,  4*H2)  pre-transposed input weights, gate cols [i|f|o|g]
    wh_ref   : (2, H2, 4*H2)  pre-transposed recurrent weights, gate cols [i|f|o|g]
    b_ref    : (2, 1,  4*H2)  fused bias (b_ih + b_hh), gate cols [i|f|o|g]
    out_f_ref: (T, H2)        forward hidden per time step
    out_b_ref: (T, H2)        backward hidden per time step (stored at its time index)
    hn_ref   : (2, H2)        final hidden  (aliased onto h0's HBM buffer)
    cn_ref   : (2, H2)        final cell    (aliased onto c0's HBM buffer)
    """
    T = xs_ref.shape[0]
    H2 = wh_ref.shape[1]

    # Load weights once; they stay resident for the whole time loop.
    wx_f, wx_b = wx_ref[0], wx_ref[1]
    wh_f, wh_b = wh_ref[0], wh_ref[1]
    b_f, b_b = b_ref[0], b_ref[1]

    def lstm_step(x, h, c, wx, wh, b):
        gates = (jnp.dot(x, wx, preferred_element_type=jnp.float32)
                 + jnp.dot(h, wh, preferred_element_type=jnp.float32)
                 + b)                                   # (1, 4*H2)
        sig = jax.nn.sigmoid(gates[:, :3 * H2])         # whole-block sigmoid over [i|f|o]
        g = jnp.tanh(gates[:, 3 * H2:])                 # whole-block tanh over [g]
        i = sig[:, :H2]
        f = sig[:, H2:2 * H2]
        o = sig[:, 2 * H2:]
        c_new = f * c + i * g
        h_new = o * jnp.tanh(c_new)
        return h_new, c_new

    def body(t, carry):
        h_f, c_f, h_b, c_b = carry
        x_f = xs_ref[pl.ds(t, 1), :]                    # (1, E)
        x_b = xs_ref[pl.ds(T - 1 - t, 1), :]            # time-reversed input for backward dir
        h_f, c_f = lstm_step(x_f, h_f, c_f, wx_f, wh_f, b_f)
        h_b, c_b = lstm_step(x_b, h_b, c_b, wx_b, wh_b, b_b)
        out_f_ref[pl.ds(t, 1), :] = h_f
        out_b_ref[pl.ds(T - 1 - t, 1), :] = h_b
        return h_f, c_f, h_b, c_b

    init = (h0_ref[0:1, :], c0_ref[0:1, :], h0_ref[1:2, :], c0_ref[1:2, :])
    h_f, c_f, h_b, c_b = jax.lax.fori_loop(0, T, body, init, unroll=True)

    hn_ref[...] = jnp.concatenate([h_f, h_b], axis=0)
    cn_ref[...] = jnp.concatenate([c_f, c_b], axis=0)


def prepare_fused_weights(params, embedding_size, H2):
    """One-off prep: transpose PyTorch-layout LSTM params and permute gate columns.

    PyTorch gate-row order inside w_ih / w_hh / biases is (i, f, g, o); we reorder the
    (transposed) columns to [i | f | o | g] so the kernel applies its nonlinearities as
    two contiguous blocks.  Biases are fused (b_ih + b_hh) here, not in the hot path.
    """
    del embedding_size  # implied by param shapes
    perm = jnp.concatenate([jnp.arange(0, 2 * H2),        # i, f
                            jnp.arange(3 * H2, 4 * H2),    # o
                            jnp.arange(2 * H2, 3 * H2)])   # g
    wx = jnp.transpose(params["w_ih"].astype(jnp.float32), (0, 2, 1))[:, :, perm]   # (2, E, 4*H2)
    wh = jnp.transpose(params["w_hh"].astype(jnp.float32), (0, 2, 1))[:, :, perm]   # (2, H2, 4*H2)
    b = (params["b_ih"] + params["b_hh"]).astype(jnp.float32)[:, perm]
    b = b.reshape(2, 1, 4 * H2)
    return wx, wh, b


def _birnn_seq_call(wx, wh, b, xs, h0, c0):
    """xs: (T, E); h0, c0: (2, H2).  Returns ((T, 2*H2) output, (2, H2) h_n, (2, H2) c_n)."""
    T = xs.shape[0]
    H2 = wh.shape[1]
    vmem = pl.BlockSpec(memory_space=pltpu.MemorySpace.VMEM)

    out_f, out_b, hn, cn = pl.pallas_call(
        _birnn_seq_kernel,
        out_shape=(
            jax.ShapeDtypeStruct((T, H2), jnp.float32),
            jax.ShapeDtypeStruct((T, H2), jnp.float32),
            jax.ShapeDtypeStruct((2, H2), jnp.float32),
            jax.ShapeDtypeStruct((2, H2), jnp.float32),
        ),
        in_specs=[vmem] * 6,
        out_specs=(vmem, vmem, vmem, vmem),
        # Carry recurrent state in place: h0 -> h_n, c0 -> c_n.
        input_output_aliases={1: 2, 2: 3},
    )(xs, h0, c0, wx, wh, b)

    output = jnp.concatenate([out_f, out_b], axis=-1)     # (T, 2*H2), once per sequence
    return output, hn, cn


def encoder_birnn_forward(fused, x, hidden):
    """JAX/Pallas equivalent of EncoderBiRNN.forward(input, hidden): seq_len=1, batch=1."""
    wx, wh, b = fused
    h0, c0 = hidden
    H2 = h0.shape[-1]
    xs = x.reshape(1, -1).astype(jnp.float32)
    out, hn, cn = _birnn_seq_call(wx, wh, b, xs,
                                  h0.reshape(2, H2).astype(jnp.float32),
                                  c0.reshape(2, H2).astype(jnp.float32))
    output = out.reshape(1, 1, 2 * H2)                    # (seq=1, batch=1, hidden)
    return output, (hn.reshape(2, 1, H2), cn.reshape(2, 1, H2))


def encoder_birnn_sequence(fused, xs, hidden):
    """Drive the encoder over a whole (T, E) sequence with ONE pallas_call (in-kernel T-loop)."""
    wx, wh, b = fused
    h0, c0 = hidden
    H2 = h0.shape[-1]
    T = xs.shape[0]
    out, hn, cn = _birnn_seq_call(wx, wh, b, xs.astype(jnp.float32),
                                  h0.reshape(2, H2).astype(jnp.float32),
                                  c0.reshape(2, H2).astype(jnp.float32))
    return out.reshape(T, 1, 2 * H2), (hn.reshape(2, 1, H2), cn.reshape(2, 1, H2))


encoder_birnn_forward_jit = jax.jit(encoder_birnn_forward)
encoder_birnn_sequence_jit = jax.jit(encoder_birnn_sequence)


def init_params(key, embedding_size, hidden_size):
    """Deterministic init matching nn.LSTM parameter shapes (uniform(-k, k), k=1/sqrt(H2))."""
    H2 = hidden_size // 2
    k = 1.0 / jnp.sqrt(jnp.float32(H2))
    k0, k1, k2, k3 = jax.random.split(key, 4)
    return {
        # direction-stacked: [forward, backward]; PyTorch gate-row order (i, f, g, o)
        "w_ih": jax.random.uniform(k0, (2, 4 * H2, embedding_size), jnp.float32, -k, k),
        "w_hh": jax.random.uniform(k1, (2, 4 * H2, H2), jnp.float32, -k, k),
        "b_ih": jax.random.uniform(k2, (2, 4 * H2), jnp.float32, -k, k),
        "b_hh": jax.random.uniform(k3, (2, 4 * H2), jnp.float32, -k, k),
    }


def _reference_sequence(params, xs, hidden):
    """Plain-JAX reference of a bidirectional LSTM over xs: (T, E) (PyTorch semantics)."""
    h0, c0 = hidden
    H2 = h0.shape[-1]
    T = xs.shape[0]

    def step(d, x, h, c):
        gates = (x @ params["w_ih"][d].T + h @ params["w_hh"][d].T
                 + params["b_ih"][d] + params["b_hh"][d])
        i = jax.nn.sigmoid(gates[:, 0 * H2:1 * H2])
        f = jax.nn.sigmoid(gates[:, 1 * H2:2 * H2])
        g = jnp.tanh(gates[:, 2 * H2:3 * H2])
        o = jax.nn.sigmoid(gates[:, 3 * H2:4 * H2])
        c_new = f * c + i * g
        h_new = o * jnp.tanh(c_new)
        return h_new, c_new

    h, c = h0[0], c0[0]
    outs_f = []
    for t in range(T):
        h, c = step(0, xs[t:t + 1], h, c)
        outs_f.append(h)
    hf, cf = h, c

    h, c = h0[1], c0[1]
    outs_b = [None] * T
    for t in range(T):
        h, c = step(1, xs[T - 1 - t:T - t], h, c)
        outs_b[T - 1 - t] = h
    hb, cb = h, c

    out = jnp.stack([jnp.concatenate([outs_f[t], outs_b[t]], axis=-1) for t in range(T)], axis=0)
    return out, (jnp.stack([hf, hb]), jnp.stack([cf, cb]))


if __name__ == "__main__":
    embedding_size = 32
    hidden_size = 32            # per-direction hidden = 16
    H2 = hidden_size // 2
    seq_len = 8

    key = jax.random.PRNGKey(0)
    kp, kx, kh, kc, ks = jax.random.split(key, 5)

    params = init_params(kp, embedding_size, hidden_size)
    fused = prepare_fused_weights(params, embedding_size, H2)   # one-off parameter prep

    x = jax.random.normal(kx, (embedding_size,), jnp.float32)   # EncoderBiRNN input (1-D)
    h0 = jax.random.normal(kh, (2, 1, H2), jnp.float32)         # (num_dirs, batch, H2)
    c0 = jax.random.normal(kc, (2, 1, H2), jnp.float32)

    # 1) Module-parity single step (seq=1, batch=1) -- exact EncoderBiRNN.forward semantics.
    output, (h_n, c_n) = encoder_birnn_forward_jit(fused, x, (h0, c0))
    jax.block_until_ready((output, h_n, c_n))

    ref_out, (ref_h, ref_c) = _reference_sequence(params, x.reshape(1, -1), (h0, c0))
    assert output.shape == (1, 1, hidden_size)
    assert h_n.shape == (2, 1, H2) and c_n.shape == (2, 1, H2)
    assert jnp.allclose(output, ref_out.reshape(1, 1, hidden_size), atol=1e-5)
    assert jnp.allclose(h_n, ref_h, atol=1e-5)
    assert jnp.allclose(c_n, ref_c, atol=1e-5)

    # 2) Sequence mode: whole T-step bidirectional pass fused into ONE pallas_call.
    xs = jax.random.normal(ks, (seq_len, embedding_size), jnp.float32)
    out_seq, (h_ns, c_ns) = encoder_birnn_sequence_jit(fused, xs, (h0, c0))
    jax.block_until_ready((out_seq, h_ns, c_ns))

    ref_out_s, (ref_hs, ref_cs) = _reference_sequence(params, xs, (h0, c0))
    assert out_seq.shape == (seq_len, 1, hidden_size)
    assert jnp.allclose(out_seq, ref_out_s.reshape(seq_len, 1, hidden_size), atol=1e-4)
    assert jnp.allclose(h_ns, ref_hs, atol=1e-4)
    assert jnp.allclose(c_ns, ref_cs, atol=1e-4)

    print("KERNEL_OK")
</pallas_src>

<mosaic_0001>
module attributes {stable_mosaic.version = 11 : i64} {
  func.func @_birnn_seq_kernel(%arg0: memref<1x32xf32, #tpu.memory_space<vmem>>, %arg1: memref<2x16xf32, #tpu.memory_space<vmem>>, %arg2: memref<2x16xf32, #tpu.memory_space<vmem>>, %arg3: memref<2x32x64xf32, #tpu.memory_space<vmem>>, %arg4: memref<2x16x64xf32, #tpu.memory_space<vmem>>, %arg5: memref<2x1x64xf32, #tpu.memory_space<vmem>>, %arg6: memref<1x16xf32, #tpu.memory_space<vmem>>, %arg7: memref<1x16xf32, #tpu.memory_space<vmem>>, %arg8: memref<2x16xf32, #tpu.memory_space<vmem>>, %arg9: memref<2x16xf32, #tpu.memory_space<vmem>>) attributes {dimension_semantics = [], scalar_prefetch = 0 : i64, scratch_operands = 0 : i64, tpu.core_type = #tpu.core_type<tc>} {
    %c0 = arith.constant 0 : index
    %c0_0 = arith.constant 0 : index
    %c0_1 = arith.constant 0 : index
    %0 = vector.load %arg3[%c0, %c0_0, %c0_1] : memref<2x32x64xf32, #tpu.memory_space<vmem>>, vector<1x32x64xf32>
    %1 = vector.shape_cast %0 : vector<1x32x64xf32> to vector<32x64xf32>
    %c1 = arith.constant 1 : index
    %c0_2 = arith.constant 0 : index
    %c0_3 = arith.constant 0 : index
    %2 = vector.load %arg3[%c1, %c0_2, %c0_3] : memref<2x32x64xf32, #tpu.memory_space<vmem>>, vector<1x32x64xf32>
    %3 = vector.shape_cast %2 : vector<1x32x64xf32> to vector<32x64xf32>
    %c0_4 = arith.constant 0 : index
    %c0_5 = arith.constant 0 : index
    %c0_6 = arith.constant 0 : index
    %4 = vector.load %arg4[%c0_4, %c0_5, %c0_6] : memref<2x16x64xf32, #tpu.memory_space<vmem>>, vector<1x16x64xf32>
    %5 = vector.shape_cast %4 : vector<1x16x64xf32> to vector<16x64xf32>
    %c1_7 = arith.constant 1 : index
    %c0_8 = arith.constant 0 : index
    %c0_9 = arith.constant 0 : index
    %6 = vector.load %arg4[%c1_7, %c0_8, %c0_9] : memref<2x16x64xf32, #tpu.memory_space<vmem>>, vector<1x16x64xf32>
    %7 = vector.shape_cast %6 : vector<1x16x64xf32> to vector<16x64xf32>
    %c0_10 = arith.constant 0 : index
    %c0_11 = arith.constant 0 : index
    %c0_12 = arith.constant 0 : index
    %8 = vector.load %arg5[%c0_10, %c0_11, %c0_12] : memref<2x1x64xf32, #tpu.memory_space<vmem>>, vector<1x1x64xf32>
    %9 = vector.shape_cast %8 : vector<1x1x64xf32> to vector<1x64xf32>
    %c1_13 = arith.constant 1 : index
    %c0_14 = arith.constant 0 : index
    %c0_15 = arith.constant 0 : index
    %10 = vector.load %arg5[%c1_13, %c0_14, %c0_15] : memref<2x1x64xf32, #tpu.memory_space<vmem>>, vector<1x1x64xf32>
    %11 = vector.shape_cast %10 : vector<1x1x64xf32> to vector<1x64xf32>
    %c0_16 = arith.constant 0 : index
    %c0_17 = arith.constant 0 : index
    %12 = vector.load %arg1[%c0_16, %c0_17] : memref<2x16xf32, #tpu.memory_space<vmem>>, vector<1x16xf32>
    %c0_18 = arith.constant 0 : index
    %c0_19 = arith.constant 0 : index
    %13 = vector.load %arg2[%c0_18, %c0_19] : memref<2x16xf32, #tpu.memory_space<vmem>>, vector<1x16xf32>
    %c1_20 = arith.constant 1 : index
    %c0_21 = arith.constant 0 : index
    %14 = vector.load %arg1[%c1_20, %c0_21] : memref<2x16xf32, #tpu.memory_space<vmem>>, vector<1x16xf32>
    %c1_22 = arith.constant 1 : index
    %c0_23 = arith.constant 0 : index
    %15 = vector.load %arg2[%c1_22, %c0_23] : memref<2x16xf32, #tpu.memory_space<vmem>>, vector<1x16xf32>
    %c0_i32 = arith.constant 0 : i32
    %16 = arith.index_cast %c0_i32 : i32 to index
    %c0_24 = arith.constant 0 : index
    %17 = vector.load %arg0[%16, %c0_24] : memref<1x32xf32, #tpu.memory_space<vmem>>, vector<1x32xf32>
    %c0_i32_25 = arith.constant 0 : i32
    %18 = arith.subi %c0_i32_25, %c0_i32 : i32
    %19 = arith.index_cast %18 : i32 to index
    %c0_26 = arith.constant 0 : index
    %20 = vector.load %arg0[%19, %c0_26] : memref<1x32xf32, #tpu.memory_space<vmem>>, vector<1x32xf32>
    %cst = arith.constant dense<0.000000e+00> : vector<1x64xf32>
    %21 = tpu.matmul %17, %1, %cst {dimension_numbers = #tpu.dot_dimension_numbers<[1], [0], [0], [1], [0, 0, 1, 1], [], []>} : vector<1x32xf32>, vector<32x64xf32>, vector<1x64xf32> -> vector<1x64xf32>
    %cst_27 = arith.constant dense<0.000000e+00> : vector<1x64xf32>
    %22 = tpu.matmul %12, %5, %cst_27 {dimension_numbers = #tpu.dot_dimension_numbers<[1], [0], [0], [1], [0, 0, 1, 1], [], []>} : vector<1x16xf32>, vector<16x64xf32>, vector<1x64xf32> -> vector<1x64xf32>
    %23 = arith.addf %21, %22 : vector<1x64xf32>
    %24 = arith.addf %23, %9 : vector<1x64xf32>
    %25 = vector.extract_strided_slice %24 {offsets = [0, 0], sizes = [1, 48], strides = [1, 1]} : vector<1x64xf32> to vector<1x48xf32>
    %26 = arith.negf %25 : vector<1x48xf32>
    %27 = math.exp %26 : vector<1x48xf32>
    %cst_28 = arith.constant 1.000000e+00 : f32
    %28 = vector.broadcast %cst_28 : f32 to vector<1x48xf32>
    %29 = arith.addf %28, %27 : vector<1x48xf32>
    %30 = arith.divf %28, %29 : vector<1x48xf32>
    %31 = vector.extract_strided_slice %24 {offsets = [0, 48], sizes = [1, 16], strides = [1, 1]} : vector<1x64xf32> to vector<1x16xf32>
    %32 = math.tanh %31 : vector<1x16xf32>
    %33 = vector.extract_strided_slice %30 {offsets = [0, 0], sizes = [1, 16], strides = [1, 1]} : vector<1x48xf32> to vector<1x16xf32>
    %34 = vector.extract_strided_slice %30 {offsets = [0, 16], sizes = [1, 16], strides = [1, 1]} : vector<1x48xf32> to vector<1x16xf32>
    %35 = vector.extract_strided_slice %30 {offsets = [0, 32], sizes = [1, 16], strides = [1, 1]} : vector<1x48xf32> to vector<1x16xf32>
    %36 = arith.mulf %34, %13 : vector<1x16xf32>
    %37 = arith.mulf %33, %32 : vector<1x16xf32>
    %38 = arith.addf %36, %37 : vector<1x16xf32>
    %39 = math.tanh %38 : vector<1x16xf32>
    %40 = arith.mulf %35, %39 : vector<1x16xf32>
    %cst_29 = arith.constant dense<0.000000e+00> : vector<1x64xf32>
    %41 = tpu.matmul %20, %3, %cst_29 {dimension_numbers = #tpu.dot_dimension_numbers<[1], [0], [0], [1], [0, 0, 1, 1], [], []>} : vector<1x32xf32>, vector<32x64xf32>, vector<1x64xf32> -> vector<1x64xf32>
    %cst_30 = arith.constant dense<0.000000e+00> : vector<1x64xf32>
    %42 = tpu.matmul %14, %7, %cst_30 {dimension_numbers = #tpu.dot_dimension_numbers<[1], [0], [0], [1], [0, 0, 1, 1], [], []>} : vector<1x16xf32>, vector<16x64xf32>, vector<1x64xf32> -> vector<1x64xf32>
    %43 = arith.addf %41, %42 : vector<1x64xf32>
    %44 = arith.addf %43, %11 : vector<1x64xf32>
    %45 = vector.extract_strided_slice %44 {offsets = [0, 0], sizes = [1, 48], strides = [1, 1]} : vector<1x64xf32> to vector<1x48xf32>
    %46 = arith.negf %45 : vector<1x48xf32>
    %47 = math.exp %46 : vector<1x48xf32>
    %cst_31 = arith.constant 1.000000e+00 : f32
    %48 = vector.broadcast %cst_31 : f32 to vector<1x48xf32>
    %49 = arith.addf %48, %47 : vector<1x48xf32>
    %50 = arith.divf %48, %49 : vector<1x48xf32>
    %51 = vector.extract_strided_slice %44 {offsets = [0, 48], sizes = [1, 16], strides = [1, 1]} : vector<1x64xf32> to vector<1x16xf32>
    %52 = math.tanh %51 : vector<1x16xf32>
    %53 = vector.extract_strided_slice %50 {offsets = [0, 0], sizes = [1, 16], strides = [1, 1]} : vector<1x48xf32> to vector<1x16xf32>
    %54 = vector.extract_strided_slice %50 {offsets = [0, 16], sizes = [1, 16], strides = [1, 1]} : vector<1x48xf32> to vector<1x16xf32>
    %55 = vector.extract_strided_slice %50 {offsets = [0, 32], sizes = [1, 16], strides = [1, 1]} : vector<1x48xf32> to vector<1x16xf32>
    %56 = arith.mulf %54, %15 : vector<1x16xf32>
    %57 = arith.mulf %53, %52 : vector<1x16xf32>
    %58 = arith.addf %56, %57 : vector<1x16xf32>
    %59 = math.tanh %58 : vector<1x16xf32>
    %60 = arith.mulf %55, %59 : vector<1x16xf32>
    %61 = arith.index_cast %c0_i32 : i32 to index
    %c0_32 = arith.constant 0 : index
    %62 = vector.load %arg6[%61, %c0_32] : memref<1x16xf32, #tpu.memory_space<vmem>>, vector<1x16xf32>
    tpu.vector_store %arg6[%61, %c0_32], %40 {strides = array<i32>} : memref<1x16xf32, #tpu.memory_space<vmem>>, vector<1x16xf32>,
    %c0_i32_33 = arith.constant 0 : i32
    %63 = arith.subi %c0_i32_33, %c0_i32 : i32
    %64 = arith.index_cast %63 : i32 to index
    %c0_34 = arith.constant 0 : index
    %65 = vector.load %arg7[%64, %c0_34] : memref<1x16xf32, #tpu.memory_space<vmem>>, vector<1x16xf32>
    tpu.vector_store %arg7[%64, %c0_34], %60 {strides = array<i32>} : memref<1x16xf32, #tpu.memory_space<vmem>>, vector<1x16xf32>,
    %c1_i32 = arith.constant 1 : i32
    %66 = tpu.concatenate %40, %60 in 0 : vector<1x16xf32>, vector<1x16xf32> -> vector<2x16xf32>
    %c0_35 = arith.constant 0 : index
    %c0_36 = arith.constant 0 : index
    %67 = vector.load %arg8[%c0_35, %c0_36] : memref<2x16xf32, #tpu.memory_space<vmem>>, vector<2x16xf32>
    tpu.vector_store %arg8[%c0_35, %c0_36], %66 {strides = array<i32>} : memref<2x16xf32, #tpu.memory_space<vmem>>, vector<2x16xf32>,
    %68 = tpu.concatenate %38, %58 in 0 : vector<1x16xf32>, vector<1x16xf32> -> vector<2x16xf32>
    %c0_37 = arith.constant 0 : index
    %c0_38 = arith.constant 0 : index
    %69 = vector.load %arg9[%c0_37, %c0_38] : memref<2x16xf32, #tpu.memory_space<vmem>>, vector<2x16xf32>
    tpu.vector_store %arg9[%c0_37, %c0_38], %68 {strides = array<i32>} : memref<2x16xf32, #tpu.memory_space<vmem>>, vector<2x16xf32>,
    return
  }
}

</mosaic_0001>

<llo_original>
// kernel: encoder_birnn_forward.1
$region0: #{encoder_birnn_forward.1}
  #allocation0 [shape = 'u32[]', space=smem, size = 0x4, offset = 0x4, fixed_abs, tag = 'smem constant byte address 0x4 - core index']
  #allocation1 [shape = 'u32[144,128]{1,0:T(1,128)}', space=vmem, size = 0x12000, scoped, tag = 'internal scratch']
  %s0 = inlined_call_operand.hbm [shape: f32[1,32], index: 0, kind: input, shape index: {}]
  %s1 = inlined_call_operand.vmem [shape: f32[2,16], index: 1, kind: input, shape index: {}, may-alias: {1,8}]
  %s2 = inlined_call_operand.vmem [shape: f32[2,16], index: 2, kind: input, shape index: {}, may-alias: {2,9}]
  %s3 = inlined_call_operand.hbm [shape: f32[2,32,64], index: 3, kind: input, shape index: {}]
  %s4 = inlined_call_operand.vmem [shape: f32[2,16,64], index: 4, kind: input, shape index: {}]
  %s5 = inlined_call_operand.hbm [shape: f32[2,1,64], index: 5, kind: input, shape index: {}]
  %s6 = inlined_call_operand.vmem [shape: f32[1,16], index: 6, kind: output, shape index: {0}]
  %s7 = inlined_call_operand.vmem [shape: f32[1,16], index: 7, kind: output, shape index: {1}]
  %s8 = inlined_call_operand.vmem [shape: f32[2,16], index: 8, kind: output, shape index: {2}, may-alias: {1,8}]
  %s9 = inlined_call_operand.vmem [shape: f32[2,16], index: 9, kind: output, shape index: {3}, may-alias: {2,9}]
  %10 = xla_tuple %s6, %s7, %s8, %s9
  %s11 = sld [smem:[#allocation0]]
  $region70: #{encoder_birnn_forward.1} parent=0
    _
  %s13 = ssub.s32 1, %s11
  %s14 = scalar_select 0, %s13, %s11
  $region1: #{encoder_birnn_forward.1} parent=0
    #allocation2 [shape = 'u8[512]{0}', space=vmem, size = 0x400, scoped, tag = 'input window, operand 0, single buffered']
    #allocation3 [shape = 's32[1]{0}', space=sflag, size = 0x4, scoped, tag = 'scoped memory for encoder_birnn_forward.1']
    #allocation4 [shape = 'u8[32768]{0}', space=vmem, size = 0x8000, scoped, tag = 'input window, operand 3, single buffered']
    #allocation5 [shape = 's32[1]{0}', space=sflag, size = 0x4, scoped, tag = 'scoped memory for encoder_birnn_forward.1']
    #allocation6 [shape = 'u8[1024]{0}', space=vmem, size = 0x400, scoped, tag = 'input window, operand 5, single buffered']
    %15 = vsyncpa [#allocation3], 0
    %16 = vsyncpa [#allocation5], 0
    // Predicated region
    $region2: #{encoder_birnn_forward.1} parent=1 // pred_check
      _
    $region3: #{encoder_birnn_forward.1} parent=1 // pred_check_branch
      %18 = sbr.rel (0) target = $region5
    $region4: #{encoder_birnn_forward.1} parent=1 // pred_region
      %s20 = ssub.s32 16, 16
      %21 = vsyncadd [#allocation3], %s20
      %s23 = sshll.u32 [#allocation2], 4
      %s24 = int_to_ptr.vmem [resolvable:$true] %s23
      %26 = dma.hbm_to_vmem [thread:$0]  %s0, 16, %s24, [#allocation3]
    $region5: #{encoder_birnn_forward.1} parent=1 // pred_fallthru
      _
    // Predicated region
    $region6: #{encoder_birnn_forward.1} parent=1 // pred_check
      _
    $region7: #{encoder_birnn_forward.1} parent=1 // pred_check_branch
      %28 = sbr.rel (0) target = $region9
    $region8: #{encoder_birnn_forward.1} parent=1 // pred_region
      _
    $region9: #{encoder_birnn_forward.1} parent=1 // pred_fallthru
      _
    // Predicated region
    $region10: #{encoder_birnn_forward.1} parent=1 // pred_check
      _
    $region11: #{encoder_birnn_forward.1} parent=1 // pred_check_branch
      %30 = sbr.rel (0) target = $region13
    $region12: #{encoder_birnn_forward.1} parent=1 // pred_region
      _
    $region13: #{encoder_birnn_forward.1} parent=1 // pred_fallthru
      _
    // Predicated region
    $region14: #{encoder_birnn_forward.1} parent=1 // pred_check
      _
    $region15: #{encoder_birnn_forward.1} parent=1 // pred_check_branch
      %32 = sbr.rel (0) target = $region17
    $region16: #{encoder_birnn_forward.1} parent=1 // pred_region
      %s34 = ssub.s32 1024, 1024
      %35 = vsyncadd [#allocation5], %s34
      %s36 = sshll.u32 [#allocation4], 4
      %s37 = int_to_ptr.vmem [resolvable:$true] %s36
      %42 = dma.hbm_to_vmem [thread:$0]  %s3, 1024, %s37, [#allocation5], 128, 128, 8
    $region17: #{encoder_birnn_forward.1} parent=1 // pred_fallthru
      _
    // Predicated region
    $region18: #{encoder_birnn_forward.1} parent=1 // pred_check
      _
    $region19: #{encoder_birnn_forward.1} parent=1 // pred_check_branch
      %44 = sbr.rel (0) target = $region21
    $region20: #{encoder_birnn_forward.1} parent=1 // pred_region
      _
    $region21: #{encoder_birnn_forward.1} parent=1 // pred_fallthru
      _
    // Predicated region
    $region22: #{encoder_birnn_forward.1} parent=1 // pred_check
      _
    $region23: #{encoder_birnn_forward.1} parent=1 // pred_check_branch
      %46 = sbr.rel (0) target = $region25
    $region24: #{encoder_birnn_forward.1} parent=1 // pred_region
      %s48 = ssub.s32 32, 32
      %49 = vsyncadd [#allocation5], %s48
      %s50 = sshll.u32 [#allocation6], 4
      %s51 = int_to_ptr.vmem [resolvable:$true] %s50
      %56 = dma.hbm_to_vmem [thread:$0]  %s5, 32, %s51, [#allocation5], 16, 16, 1
    $region25: #{encoder_birnn_forward.1} parent=1 // pred_fallthru
      _
    // Predicated region
    $region26: #{encoder_birnn_forward.1} parent=1 // pred_check
      _
    $region27: #{encoder_birnn_forward.1} parent=1 // pred_check_branch
      %58 = sbr.rel (0) target = $region29
    $region28: #{encoder_birnn_forward.1} parent=1 // pred_region
      %59 = dma.done [#allocation3], 16
    $region29: #{encoder_birnn_forward.1} parent=1 // pred_fallthru
      _
    // Predicated region
    $region30: #{encoder_birnn_forward.1} parent=1 // pred_check
      _
    $region31: #{encoder_birnn_forward.1} parent=1 // pred_check_branch
      %61 = sbr.rel (0) target = $region33
    $region32: #{encoder_birnn_forward.1} parent=1 // pred_region
      %62 = dma.done [#allocation5], 1024
    $region33: #{encoder_birnn_forward.1} parent=1 // pred_fallthru
      _
    // Predicated region
    $region34: #{encoder_birnn_forward.1} parent=1 // pred_check
      _
    $region35: #{encoder_birnn_forward.1} parent=1 // pred_check_branch
      %64 = sbr.rel (0) target = $region37
    $region36: #{encoder_birnn_forward.1} parent=1 // pred_region
      %65 = dma.done [#allocation5], 32
    $region37: #{encoder_birnn_forward.1} parent=1 // pred_fallthru
      _
    %v66 = vld [vmem:[#allocation4] sm:$0xff]
    %v67 = vld [vmem:[#allocation4 + $0x8] sm:$0xff]
    %v68 = vld [vmem:[#allocation4 + $0x10] sm:$0xff]
    %v69 = vld [vmem:[#allocation4 + $0x18] sm:$0xff]
    %s70 = scalar_lea.vmem [#allocation4], 32
    %v71 = vld [vmem:[%s70] sm:$0xff]
    %v72 = vld [vmem:[%s70 + $0x8] sm:$0xff]
    %v73 = vld [vmem:[%s70 + $0x10] sm:$0xff]
    %v74 = vld [vmem:[%s70 + $0x18] sm:$0xff]
    %v75 = vld [vmem:[%s4] sm:$0xff]
    %v76 = vld [vmem:[%s4 + $0x8] sm:$0xff]
    %s77 = scalar_lea.vmem %s4, 16
    %v78 = vld [vmem:[%s77] sm:$0xff]
    %v79 = vld [vmem:[%s77 + $0x8] sm:$0xff]
    %v80 = vld [vmem:[#allocation6] sm:$0x1]
    %s81 = scalar_lea.vmem [#allocation6], 1
    %v82 = vld [vmem:[%s81] sm:$0x1]
    %v83 = vld [vmem:[%s1] sm:$0x1]
    %v84 = vld [vmem:[%s2] sm:$0x1]
    %v85 = vld [vmem:[%s1 + $0x1] sm:$0x1]
    %v86 = vld [vmem:[%s2 + $0x1] sm:$0x1]
    %v87 = vld [vmem:[#allocation2] sm:$0x1]
    %vm88 = vcmask 130048
    %v90 = vsel %vm88, %v83, 0
    %92 = vmatprep.subr.mxu0 0.0
    %93 = vmatpush1.msra.mxu0 %v75
    %94 = vmatprep.subr.mxu0 0.0
    %95 = vmatpush1.msra.mxu0 %v76
    %96 = vmatprep.subr.mxu0 0.0
    %97 = vmatpush1.msra.mxu0 0.0
    %98 = vmatprep.subr.mxu0 0.0
    %99 = vmatpush1.msra.mxu0 0.0
    %100 = vmatprep.subr.mxu0 0.0
    %101 = vmatpush1.msra.mxu0 0.0
    %102 = vmatprep.subr.mxu0 0.0
    %103 = vmatpush1.msra.mxu0 0.0
    %104 = vmatprep.subr.mxu0 0.0
    %105 = vmatpush1.msra.mxu0 0.0
    %106 = vmatprep.subr.mxu0 0.0
    %107 = vmatpush1.msra.mxu0 0.0
    %108 = vmatprep.subr.mxu0 0.0
    %109 = vmatpush1.msra.mxu0 0.0
    %110 = vmatprep.subr.mxu0 0.0
    %111 = vmatpush1.msra.mxu0 0.0
    %112 = vmatprep.subr.mxu0 0.0
    %113 = vmatpush1.msra.mxu0 0.0
    %114 = vmatprep.subr.mxu0 0.0
    %115 = vmatpush1.msra.mxu0 0.0
    %116 = vmatprep.subr.mxu0 0.0
    %117 = vmatpush1.msra.mxu0 0.0
    %118 = vmatprep.subr.mxu0 0.0
    %119 = vmatpush1.msra.mxu0 0.0
    %120 = vmatprep.subr.mxu0 0.0
    %121 = vmatpush1.msra.mxu0 0.0
    %122 = vmatprep.subr.mxu0 0.0
    %123 = vmatpush1.msra.mxu0 0.0
    %124 = vmatprep.subr.mxu0 0.0
    %125 = vmatpush1.msra.mxu0 0.0
    %126 = vmatprep.subr.mxu0 0.0
    %127 = vmatpush1.msra.mxu0 0.0
    %128 = vmatprep.subr.mxu0 0.0
    %129 = vmatpush1.msra.mxu0 0.0
    %130 = vmatprep.subr.mxu0 0.0
    %131 = vmatpush1.msra.mxu0 0.0
    %132 = vmatprep.subr.mxu0 0.0
    %133 = vmatpush1.msra.mxu0 0.0
    %134 = vmatprep.subr.mxu0 0.0
    %135 = vmatpush1.msra.mxu0 0.0
    %136 = vmatprep.subr.mxu0 0.0
    %137 = vmatpush1.msra.mxu0 0.0
    %138 = vmatprep.subr.mxu0 0.0
    %139 = vmatpush1.msra.mxu0 0.0
    %140 = vmatprep.subr.mxu0 0.0
    %141 = vmatpush1.msra.mxu0 0.0
    %142 = vmatprep.subr.mxu0 0.0
    %143 = vmatpush1.msra.mxu0 0.0
    %144 = vmatprep.subr.mxu0 0.0
    %145 = vmatpush1.msra.mxu0 0.0
    %146 = vmatprep.subr.mxu0 0.0
    %147 = vmatpush1.msra.mxu0 0.0
    %148 = vmatprep.subr.mxu0 0.0
    %149 = vmatpush1.msra.mxu0 0.0
    %150 = vmatprep.subr.mxu0 0.0
    %151 = vmatpush1.msra.mxu0 0.0
    %152 = vmatprep.subr.mxu0 0.0
    %153 = vmatpush1.msra.mxu0 0.0
    %154 = vmatprep.subr.mxu0 0.0
    %155 = vmatpush1.msra.mxu0 0.0
    %156 = vmatprep.mubr.f32.mxu0 0.0
    %157 = vmatmul.mubr.f32.gmra.mrb[0].mxu0 %v90
    %v158 = vpop.f32.mrb[0].mxu0
    %v159 = vadd.f32 0.0, %v158
    %v160 = vpop.f32.mrb[0].mxu0
    %161 = vdwg.mxu0
    %vm162 = vcmask 261120
    %v164 = vsel %vm162, %v87, 0
    %166 = vmatprep.subr.mxu0 0.0
    %167 = vmatpush1.msra.mxu0 %v66
    %168 = vmatprep.subr.mxu0 0.0
    %169 = vmatpush1.msra.mxu0 %v67
    %170 = vmatprep.subr.mxu0 0.0
    %171 = vmatpush1.msra.mxu0 %v68
    %172 = vmatprep.subr.mxu0 0.0
    %173 = vmatpush1.msra.mxu0 %v69
    %174 = vmatprep.subr.mxu0 0.0
    %175 = vmatpush1.msra.mxu0 0.0
    %176 = vmatprep.subr.mxu0 0.0
    %177 = vmatpush1.msra.mxu0 0.0
    %178 = vmatprep.subr.mxu0 0.0
    %179 = vmatpush1.msra.mxu0 0.0
    %180 = vmatprep.subr.mxu0 0.0
    %181 = vmatpush1.msra.mxu0 0.0
    %182 = vmatprep.subr.mxu0 0.0
    %183 = vmatpush1.msra.mxu0 0.0
    %184 = vmatprep.subr.mxu0 0.0
    %185 = vmatpush1.msra.mxu0 0.0
    %186 = vmatprep.subr.mxu0 0.0
    %187 = vmatpush1.msra.mxu0 0.0
    %188 = vmatprep.subr.mxu0 0.0
    %189 = vmatpush1.msra.mxu0 0.0
    %190 = vmatprep.subr.mxu0 0.0
    %191 = vmatpush1.msra.mxu0 0.0
    %192 = vmatprep.subr.mxu0 0.0
    %193 = vmatpush1.msra.mxu0 0.0
    %194 = vmatprep.subr.mxu0 0.0
    %195 = vmatpush1.msra.mxu0 0.0
    %196 = vmatprep.subr.mxu0 0.0
    %197 = vmatpush1.msra.mxu0 0.0
    %198 = vmatprep.subr.mxu0 0.0
    %199 = vmatpush1.msra.mxu0 0.0
    %200 = vmatprep.subr.mxu0 0.0
    %201 = vmatpush1.msra.mxu0 0.0
    %202 = vmatprep.subr.mxu0 0.0
    %203 = vmatpush1.msra.mxu0 0.0
    %204 = vmatprep.subr.mxu0 0.0
    %205 = vmatpush1.msra.mxu0 0.0
    %206 = vmatprep.subr.mxu0 0.0
    %207 = vmatpush1.msra.mxu0 0.0
    %208 = vmatprep.subr.mxu0 0.0
    %209 = vmatpush1.msra.mxu0 0.0
    %210 = vmatprep.subr.mxu0 0.0
    %211 = vmatpush1.msra.mxu0 0.0
    %212 = vmatprep.subr.mxu0 0.0
    %213 = vmatpush1.msra.mxu0 0.0
    %214 = vmatprep.subr.mxu0 0.0
    %215 = vmatpush1.msra.mxu0 0.0
    %216 = vmatprep.subr.mxu0 0.0
    %217 = vmatpush1.msra.mxu0 0.0
    %218 = vmatprep.subr.mxu0 0.0
    %219 = vmatpush1.msra.mxu0 0.0
    %220 = vmatprep.subr.mxu0 0.0
    %221 = vmatpush1.msra.mxu0 0.0
    %222 = vmatprep.subr.mxu0 0.0
    %223 = vmatpush1.msra.mxu0 0.0
    %224 = vmatprep.subr.mxu0 0.0
    %225 = vmatpush1.msra.mxu0 0.0
    %226 = vmatprep.subr.mxu0 0.0
    %227 = vmatpush1.msra.mxu0 0.0
    %228 = vmatprep.subr.mxu0 0.0
    %229 = vmatpush1.msra.mxu0 0.0
    %230 = vmatprep.mubr.f32.mxu0 0.0
    %231 = vmatmul.mubr.f32.gmra.mrb[0].mxu0 %v164
    %v232 = vpop.f32.mrb[0].mxu0
    %v233 = vadd.f32 %v159, %v232
    %v234 = vpop.f32.mrb[0].mxu0
    %235 = vdwg.mxu0
    %v236 = vadd.f32 %v233, %v80
    %v237 = vxor.u32 %v236, 2147483648
    %v238 = vmul.f32 %v237, 1.442695
    %v239 = vpow.pop %v238
    %v240 = vadd.f32 %v239, 1.0
    %v241 = vrcp.pop %v240
    %v242 = vmul.f32 1.0, %v241
    %v243 = vtanh.pop %v236
    %245 = vrot.lane.b32.xlu0 %v84, 16
    %v246 = vpop.permute.xlu0 %245
    %v248 = vmul.f32 %v242, %v246
    %250 = vrot.lane.b32.xlu0 %v243, 80
    %v251 = vpop.permute.xlu0 %250
    %v253 = vmul.f32 %v242, %v251
    %255 = vrot.lane.b32.xlu0 %v253, 16
    %v256 = vpop.permute.xlu0 %255
    %v258 = vadd.f32 %v248, %v256
    %v259 = vtanh.pop %v258
    %261 = vrot.lane.b32.xlu0 %v259, 16
    %v262 = vpop.permute.xlu0 %261
    %v264 = vmul.f32 %v242, %v262
    %v266 = vsel %vm88, %v85, 0
    %268 = vmatprep.subr.mxu0 0.0
    %269 = vmatpush1.msra.mxu0 %v78
    %270 = vmatprep.subr.mxu0 0.0
    %271 = vmatpush1.msra.mxu0 %v79
    %272 = vmatprep.subr.mxu0 0.0
    %273 = vmatpush1.msra.mxu0 0.0
    %274 = vmatprep.subr.mxu0 0.0
    %275 = vmatpush1.msra.mxu0 0.0
    %276 = vmatprep.subr.mxu0 0.0
    %277 = vmatpush1.msra.mxu0 0.0
    %278 = vmatprep.subr.mxu0 0.0
    %279 = vmatpush1.msra.mxu0 0.0
    %280 = vmatprep.subr.mxu0 0.0
    %281 = vmatpush1.msra.mxu0 0.0
    %282 = vmatprep.subr.mxu0 0.0
    %283 = vmatpush1.msra.mxu0 0.0
    %284 = vmatprep.subr.mxu0 0.0
    %285 = vmatpush1.msra.mxu0 0.0
    %286 = vmatprep.subr.mxu0 0.0
    %287 = vmatpush1.msra.mxu0 0.0
    %288 = vmatprep.subr.mxu0 0.0
    %289 = vmatpush1.msra.mxu0 0.0
    %290 = vmatprep.subr.mxu0 0.0
    %291 = vmatpush1.msra.mxu0 0.0
    %292 = vmatprep.subr.mxu0 0.0
    %293 = vmatpush1.msra.mxu0 0.0
    %294 = vmatprep.subr.mxu0 0.0
    %295 = vmatpush1.msra.mxu0 0.0
    %296 = vmatprep.subr.mxu0 0.0
    %297 = vmatpush1.msra.mxu0 0.0
    %298 = vmatprep.subr.mxu0 0.0
    %299 = vmatpush1.msra.mxu0 0.0
    %300 = vmatprep.subr.mxu0 0.0
    %301 = vmatpush1.msra.mxu0 0.0
    %302 = vmatprep.subr.mxu0 0.0
    %303 = vmatpush1.msra.mxu0 0.0
    %304 = vmatprep.subr.mxu0 0.0
    %305 = vmatpush1.msra.mxu0 0.0
    %306 = vmatprep.subr.mxu0 0.0
    %307 = vmatpush1.msra.mxu0 0.0
    %308 = vmatprep.subr.mxu0 0.0
    %309 = vmatpush1.msra.mxu0 0.0
    %310 = vmatprep.subr.mxu0 0.0
    %311 = vmatpush1.msra.mxu0 0.0
    %312 = vmatprep.subr.mxu0 0.0
    %313 = vmatpush1.msra.mxu0 0.0
    %314 = vmatprep.subr.mxu0 0.0
    %315 = vmatpush1.msra.mxu0 0.0
    %316 = vmatprep.subr.mxu0 0.0
    %317 = vmatpush1.msra.mxu0 0.0
    %318 = vmatprep.subr.mxu0 0.0
    %319 = vmatpush1.msra.mxu0 0.0
    %320 = vmatprep.subr.mxu0 0.0
    %321 = vmatpush1.msra.mxu0 0.0
    %322 = vmatprep.subr.mxu0 0.0
    %323 = vmatpush1.msra.mxu0 0.0
    %324 = vmatprep.subr.mxu0 0.0
    %325 = vmatpush1.msra.mxu0 0.0
    %326 = vmatprep.subr.mxu0 0.0
    %327 = vmatpush1.msra.mxu0 0.0
    %328 = vmatprep.subr.mxu0 0.0
    %329 = vmatpush1.msra.mxu0 0.0
    %330 = vmatprep.subr.mxu0 0.0
    %331 = vmatpush1.msra.mxu0 0.0
    %332 = vmatprep.mubr.f32.mxu0 0.0
    %333 = vmatmul.mubr.f32.gmra.mrb[0].mxu0 %v266
    %v334 = vpop.f32.mrb[0].mxu0
    %v335 = vadd.f32 0.0, %v334
    %v336 = vpop.f32.mrb[0].mxu0
    %337 = vdwg.mxu0
    %338 = vmatprep.subr.mxu0 0.0
    %339 = vmatpush1.msra.mxu0 %v71
    %340 = vmatprep.subr.mxu0 0.0
    %341 = vmatpush1.msra.mxu0 %v72
    %342 = vmatprep.subr.mxu0 0.0
    %343 = vmatpush1.msra.mxu0 %v73
    %344 = vmatprep.subr.mxu0 0.0
    %345 = vmatpush1.msra.mxu0 %v74
    %346 = vmatprep.subr.mxu0 0.0
    %347 = vmatpush1.msra.mxu0 0.0
    %348 = vmatprep.subr.mxu0 0.0
    %349 = vmatpush1.msra.mxu0 0.0
    %350 = vmatprep.subr.mxu0 0.0
    %351 = vmatpush1.msra.mxu0 0.0
    %352 = vmatprep.subr.mxu0 0.0
    %353 = vmatpush1.msra.mxu0 0.0
    %354 = vmatprep.subr.mxu0 0.0
    %355 = vmatpush1.msra.mxu0 0.0
    %356 = vmatprep.subr.mxu0 0.0
    %357 = vmatpush1.msra.mxu0 0.0
    %358 = vmatprep.subr.mxu0 0.0
    %359 = vmatpush1.msra.mxu0 0.0
    %360 = vmatprep.subr.mxu0 0.0
    %361 = vmatpush1.msra.mxu0 0.0
    %362 = vmatprep.subr.mxu0 0.0
    %363 = vmatpush1.msra.mxu0 0.0
    %364 = vmatprep.subr.mxu0 0.0
    %365 = vmatpush1.msra.mxu0 0.0
    %366 = vmatprep.subr.mxu0 0.0
    %367 = vmatpush1.msra.mxu0 0.0
    %368 = vmatprep.subr.mxu0 0.0
    %369 = vmatpush1.msra.mxu0 0.0
    %370 = vmatprep.subr.mxu0 0.0
    %371 = vmatpush1.msra.mxu0 0.0
    %372 = vmatprep.subr.mxu0 0.0
    %373 = vmatpush1.msra.mxu0 0.0
    %374 = vmatprep.subr.mxu0 0.0
    %375 = vmatpush1.msra.mxu0 0.0
    %376 = vmatprep.subr.mxu0 0.0
    %377 = vmatpush1.msra.mxu0 0.0
    %378 = vmatprep.subr.mxu0 0.0
    %379 = vmatpush1.msra.mxu0 0.0
    %380 = vmatprep.subr.mxu0 0.0
    %381 = vmatpush1.msra.mxu0 0.0
    %382 = vmatprep.subr.mxu0 0.0
    %383 = vmatpush1.msra.mxu0 0.0
    %384 = vmatprep.subr.mxu0 0.0
    %385 = vmatpush1.msra.mxu0 0.0
    %386 = vmatprep.subr.mxu0 0.0
    %387 = vmatpush1.msra.mxu0 0.0
    %388 = vmatprep.subr.mxu0 0.0
    %389 = vmatpush1.msra.mxu0 0.0
    %390 = vmatprep.subr.mxu0 0.0
    %391 = vmatpush1.msra.mxu0 0.0
    %392 = vmatprep.subr.mxu0 0.0
    %393 = vmatpush1.msra.mxu0 0.0
    %394 = vmatprep.subr.mxu0 0.0
    %395 = vmatpush1.msra.mxu0 0.0
    %396 = vmatprep.subr.mxu0 0.0
    %397 = vmatpush1.msra.mxu0 0.0
    %398 = vmatprep.subr.mxu0 0.0
    %399 = vmatpush1.msra.mxu0 0.0
    %400 = vmatprep.subr.mxu0 0.0
    %401 = vmatpush1.msra.mxu0 0.0
    %402 = vmatprep.mubr.f32.mxu0 0.0
    %403 = vmatmul.mubr.f32.gmra.mrb[0].mxu0 %v164
    %v404 = vpop.f32.mrb[0].mxu0
    %v405 = vadd.f32 %v335, %v404
    %v406 = vpop.f32.mrb[0].mxu0
    %407 = vdwg.mxu0
    %v408 = vadd.f32 %v405, %v82
    %v409 = vxor.u32 %v408, 2147483648
    %v410 = vmul.f32 %v409, 1.442695
    %v411 = vpow.pop %v410
    %v412 = vadd.f32 %v411, 1.0
    %v413 = vrcp.pop %v412
    %v414 = vmul.f32 1.0, %v413
    %v415 = vtanh.pop %v408
    %417 = vrot.lane.b32.xlu0 %v86, 16
    %v418 = vpop.permute.xlu0 %417
    %v420 = vmul.f32 %v414, %v418
    %422 = vrot.lane.b32.xlu0 %v415, 80
    %v423 = vpop.permute.xlu0 %422
    %v425 = vmul.f32 %v414, %v423
    %427 = vrot.lane.b32.xlu0 %v425, 16
    %v428 = vpop.permute.xlu0 %427
    %v430 = vadd.f32 %v420, %v428
    %v431 = vtanh.pop %v430
    %433 = vrot.lane.b32.xlu0 %v431, 16
    %v434 = vpop.permute.xlu0 %433
    %v436 = vmul.f32 %v414, %v434
    %438 = vrot.lane.b32.xlu0 %v264, 96
    %v439 = vpop.permute.xlu0 %438
    %vm441 = vcmask 122880
    %442 = vst.msk [vmem:[%s6] sm:$0x1] %vm441, %v439
    %444 = vrot.lane.b32.xlu0 %v436, 96
    %v445 = vpop.permute.xlu0 %444
    %447 = vst.msk [vmem:[%s7] sm:$0x1] %vm441, %v445
    %v448 = vrot.slane %v436, 7
    %vm450 = vcmask 1040384
    %v451 = vsel %vm450, %v264, %v448
    %453 = vrot.lane.b32.xlu0 %v451, 96
    %v454 = vpop.permute.xlu0 %453
    %vm456 = vcmask 123904
    %457 = vst.msk [vmem:[%s8] sm:$0x3] %vm456, %v454
    %v459 = vrot.slane %v430, 7
    %v461 = vsel %vm450, %v258, %v459
    %463 = vrot.lane.b32.xlu0 %v461, 112
    %v464 = vpop.permute.xlu0 %463
    %466 = vst.msk [vmem:[%s9] sm:$0x3] %vm456, %v464
    // Predicated region
    $region38: #{encoder_birnn_forward.1} parent=1 // pred_check
      _
    $region39: #{encoder_birnn_forward.1} parent=1 // pred_check_branch
      %468 = sbr.rel (0) target = $region41
    $region40: #{encoder_birnn_forward.1} parent=1 // pred_region
      _
    $region41: #{encoder_birnn_forward.1} parent=1 // pred_fallthru
      _
    // Predicated region
    $region42: #{encoder_birnn_forward.1} parent=1 // pred_check
      _
    $region43: #{encoder_birnn_forward.1} parent=1 // pred_check_branch
      %470 = sbr.rel (0) target = $region45
    $region44: #{encoder_birnn_forward.1} parent=1 // pred_region
      _
    $region45: #{encoder_birnn_forward.1} parent=1 // pred_fallthru
      _
    // Predicated region
    $region46: #{encoder_birnn_forward.1} parent=1 // pred_check
      _
    $region47: #{encoder_birnn_forward.1} parent=1 // pred_check_branch
      %472 = sbr.rel (0) target = $region49
    $region48: #{encoder_birnn_forward.1} parent=1 // pred_region
      _
    $region49: #{encoder_birnn_forward.1} parent=1 // pred_fallthru
      _
    // Predicated region
    $region50: #{encoder_birnn_forward.1} parent=1 // pred_check
      _
    $region51: #{encoder_birnn_forward.1} parent=1 // pred_check_branch
      %474 = sbr.rel (0) target = $region53
    $region52: #{encoder_birnn_forward.1} parent=1 // pred_region
      _
    $region53: #{encoder_birnn_forward.1} parent=1 // pred_fallthru
      _
    // Predicated region
    $region54: #{encoder_birnn_forward.1} parent=1 // pred_check
      _
    $region55: #{encoder_birnn_forward.1} parent=1 // pred_check_branch
      %476 = sbr.rel (0) target = $region57
    $region56: #{encoder_birnn_forward.1} parent=1 // pred_region
      _
    $region57: #{encoder_birnn_forward.1} parent=1 // pred_fallthru
      _
    // Predicated region
    $region58: #{encoder_birnn_forward.1} parent=1 // pred_check
      _
    $region59: #{encoder_birnn_forward.1} parent=1 // pred_check_branch
      %478 = sbr.rel (0) target = $region61
    $region60: #{encoder_birnn_forward.1} parent=1 // pred_region
      _
    $region61: #{encoder_birnn_forward.1} parent=1 // pred_fallthru
      _
    // Predicated region
    $region62: #{encoder_birnn_forward.1} parent=1 // pred_check
      _
    $region63: #{encoder_birnn_forward.1} parent=1 // pred_check_branch
      %480 = sbr.rel (0) target = $region65
    $region64: #{encoder_birnn_forward.1} parent=1 // pred_region
      _
    $region65: #{encoder_birnn_forward.1} parent=1 // pred_fallthru
      _
    // Predicated region
    $region66: #{encoder_birnn_forward.1} parent=1 // pred_check
      _
    $region67: #{encoder_birnn_forward.1} parent=1 // pred_check_branch
      %482 = sbr.rel (0) target = $region69
    $region68: #{encoder_birnn_forward.1} parent=1 // pred_region
      _
    $region69: #{encoder_birnn_forward.1} parent=1 // pred_fallthru
      _
    %483 = vsyncpa [#allocation3], 1
    %484 = vsyncpa [#allocation5], 1

</llo_original>
